<compile_context>
chip_gen: v7x
topology: tpu7x:2x2x1
jax: 0.10.0
libtpu: 0.0.40
codegen_flags: <defaults>
</compile_context>

<pallas_src>
import math

import jax
import jax.numpy as jnp
from jax.experimental import pallas as pl
from jax.experimental.pallas import tpu as pltpu


# ---------------------------------------------------------------------------
# __init__ glue: deterministic sin/cos buffer, shape (max_len, d_model).
# ---------------------------------------------------------------------------
def make_pe_table(d_model: int, max_len: int = 5000) -> jnp.ndarray:
    position = jnp.arange(max_len, dtype=jnp.float32)[:, None]          # (max_len, 1)
    div_term = jnp.exp(
        jnp.arange(0, d_model, 2, dtype=jnp.float32)
        * -(math.log(10000.0) / d_model)
    )                                                                    # (d_model/2,)
    pe = jnp.zeros((max_len, d_model), dtype=jnp.float32)
    pe = pe.at[:, 0::2].set(jnp.sin(position * div_term))
    pe = pe.at[:, 1::2].set(jnp.cos(position * div_term))
    return pe


# ---------------------------------------------------------------------------
# Kernel: lane-dense streaming add.  x/out tile (TR, TC), pe tile (1, TC).
# ---------------------------------------------------------------------------
def _pe_add_kernel(x_ref, pe_ref, o_ref):
    # (TR, TC) + (1, TC): sublane broadcast, pure vreg stream (2 loads, 1 store).
    o_ref[...] = x_ref[...] + pe_ref[...]


def _pick_tile(dim: int, unit: int, cap: int) -> int:
    """Largest multiple of `unit` that divides `dim` and is <= cap; else the full dim.

    Full-dim fallback keeps the BlockSpec legal (block == full array extent)
    when `dim` has no suitable divisor.
    """
    t = (min(dim, cap) // unit) * unit
    while t >= unit:
        if dim % t == 0:
            return t
        t -= unit
    return dim


_MAX_TILE_COLS = 2048               # lane width per tile (multiple of 128)
_MAX_TILE_BYTES = 2 * 1024 * 1024   # ~2 MiB per x tile -> ~8 MiB double-buffered in+out


def positional_encoding_forward(x: jnp.ndarray, pe: jnp.ndarray) -> jnp.ndarray:
    """x: (B, S, D); pe: (max_len, D).  Returns x + pe[None, :x.shape[0], :]."""
    B, S, D = x.shape
    seq_used = B  # PyTorch slices the pe buffer with x.size(0).
    # The PyTorch broadcast (B,S,D) + (1,seq_used,D) requires seq_used == S.
    assert seq_used == S, "PyTorch module's broadcast only valid when x.size(0) == x.size(1)"

    # Lane-dense 2D view: out[b, :] = x2d[b, :] + pe_flat[:]
    C = S * D
    x2d = x.reshape(B, C)
    pe2d = pe[:seq_used, :].reshape(1, C)

    itemsize = jnp.dtype(x.dtype).itemsize
    tc = _pick_tile(C, 128, _MAX_TILE_COLS)                       # lanes: multiple of 128
    row_cap = max(8, (_MAX_TILE_BYTES // (tc * itemsize)) // 8 * 8)
    tr = _pick_tile(B, 8, row_cap)                                # sublanes: multiple of 8

    grid = (B // tr, C // tc)

    # Note: input_output_aliases={0: 0} would drop the extra output allocation,
    # but the demo re-reads x for the reference check, so we keep x live.
    out2d = pl.pallas_call(
        _pe_add_kernel,
        out_shape=jax.ShapeDtypeStruct((B, C), x.dtype),
        grid=grid,
        in_specs=[
            pl.BlockSpec((tr, tc), lambda i, j: (i, j)),
            pl.BlockSpec((1, tc), lambda i, j: (0, j)),   # constant along row axis -> resident
        ],
        out_specs=pl.BlockSpec((tr, tc), lambda i, j: (i, j)),
        compiler_params=pltpu.CompilerParams(
            dimension_semantics=("parallel", "parallel"),
            vmem_limit_bytes=32 * 1024 * 1024,
        ),
    )(x2d, pe2d)

    return out2d.reshape(B, S, D)


if __name__ == "__main__":
    key = jax.random.PRNGKey(0)
    # Small shapes consistent with the module: B == S (required by the original
    # forward's broadcast), d_model = 32.
    B, S, D = 8, 8, 32
    max_len = 64  # module default is 5000; smaller table, same formula

    x = jax.random.normal(key, (B, S, D), dtype=jnp.float32)
    pe = make_pe_table(d_model=D, max_len=max_len)

    out = positional_encoding_forward(x, pe)
    out = jax.block_until_ready(out)

    # Reference check (plain JAX, mirrors the PyTorch forward exactly).
    ref = x + pe[None, :x.shape[0], :]
    assert out.shape == ref.shape and out.dtype == ref.dtype
    assert jnp.allclose(out, ref, atol=1e-6, rtol=1e-6)

    print("KERNEL_OK")
</pallas_src>

<mosaic_0001>
module attributes {stable_mosaic.version = 11 : i64} {
  func.func @_pe_add_kernel(%arg0: i32, %arg1: i32, %arg2: memref<8x256xf32, #tpu.memory_space<vmem>>, %arg3: memref<1x256xf32, #tpu.memory_space<vmem>>, %arg4: memref<8x256xf32, #tpu.memory_space<vmem>>) attributes {dimension_semantics = [#tpu.dimension_semantics<parallel>, #tpu.dimension_semantics<parallel>], iteration_bounds = array<i64: 1, 1>, scalar_prefetch = 0 : i64, scratch_operands = 0 : i64, tpu.core_type = #tpu.core_type<tc>, window_params = [{transform_indices = @transform_0, window_bounds = array<i64: 8, 256>}, {transform_indices = @transform_1, window_bounds = array<i64: 1, 256>}, {transform_indices = @transform_2, window_bounds = array<i64: 8, 256>}]} {
    %c0 = arith.constant 0 : index
    %c0_0 = arith.constant 0 : index
    %0 = vector.load %arg2[%c0, %c0_0] : memref<8x256xf32, #tpu.memory_space<vmem>>, vector<8x256xf32>
    %c0_1 = arith.constant 0 : index
    %c0_2 = arith.constant 0 : index
    %1 = vector.load %arg3[%c0_1, %c0_2] : memref<1x256xf32, #tpu.memory_space<vmem>>, vector<1x256xf32>
    %2 = vector.broadcast %1 : vector<1x256xf32> to vector<8x256xf32>
    %3 = arith.addf %0, %2 : vector<8x256xf32>
    %c0_3 = arith.constant 0 : index
    %c0_4 = arith.constant 0 : index
    %4 = vector.load %arg4[%c0_3, %c0_4] : memref<8x256xf32, #tpu.memory_space<vmem>>, vector<8x256xf32>
    tpu.vector_store %arg4[%c0_3, %c0_4], %3 {strides = array<i32>} : memref<8x256xf32, #tpu.memory_space<vmem>>, vector<8x256xf32>,
    return
  }
  func.func @transform_0(%arg0: i32, %arg1: i32) -> (i32, i32) {
    %c0_i32 = arith.constant 0 : i32
    return %arg0, %arg1 : i32, i32
  }
  func.func @transform_1(%arg0: i32, %arg1: i32) -> (i32, i32) {
    %c0_i32 = arith.constant 0 : i32
    %c0_i32_0 = arith.constant 0 : i32
    return %c0_i32, %arg1 : i32, i32
  }
  func.func @transform_2(%arg0: i32, %arg1: i32) -> (i32, i32) {
    %c0_i32 = arith.constant 0 : i32
    return %arg0, %arg1 : i32, i32
  }
}

</mosaic_0001>

<llo_original>
// kernel: tpu_custom_call.1
$region0: #{tpu_custom_call.1}
  #allocation0 [shape = 'u32[]', space=smem, size = 0x4, offset = 0x4, fixed_abs, tag = 'smem constant byte address 0x4 - core index']
  #allocation1 [shape = 'u32[144,128]{1,0:T(1,128)}', space=vmem, size = 0x12000, scoped, tag = 'internal scratch']
  %s0 = inlined_call_operand.hbm [shape: f32[8,256], index: 0, kind: input, shape index: {}]
  %s1 = inlined_call_operand.vmem [shape: f32[1,256], index: 1, kind: input, shape index: {}]
  %s2 = inlined_call_operand.hbm [shape: f32[8,256], index: 2, kind: output, shape index: {}]
  %s3 = sld [smem:[#allocation0]]
  $region22: #{tpu_custom_call.1} parent=0
    _
  %s5 = ssub.s32 1, %s3
  %s6 = scalar_select 0, %s5, %s3
  $region1: #{tpu_custom_call.1} parent=0
    #allocation2 [shape = 'u8[8192]{0}', space=vmem, size = 0x2000, scoped, tag = 'input window, operand 0, single buffered']
    #allocation3 [shape = 's32[1]{0}', space=sflag, size = 0x4, scoped, tag = 'scoped memory for tpu_custom_call.1']
    #allocation4 [shape = 's32[1]{0}', space=sflag, size = 0x4, scoped, tag = 'scoped memory for tpu_custom_call.1']
    #allocation5 [shape = 'u8[8192]{0}', space=vmem, size = 0x2000, scoped, tag = 'output window, operand 0, single buffered']
    %7 = vsyncpa [#allocation3], 0
    %8 = vsyncpa [#allocation4], 0
    // Predicated region
    $region2: #{tpu_custom_call.1} parent=1 // pred_check
      _
    $region3: #{tpu_custom_call.1} parent=1 // pred_check_branch
      %10 = sbr.rel (0) target = $region5
    $region4: #{tpu_custom_call.1} parent=1 // pred_region
      %s12 = ssub.s32 256, 256
      %13 = vsyncadd [#allocation3], %s12
      %s15 = sshll.u32 [#allocation2], 4
      %s16 = int_to_ptr.vmem [resolvable:$true] %s15
      %18 = dma.hbm_to_vmem [thread:$0]  %s0, 256, %s16, [#allocation3]
    $region5: #{tpu_custom_call.1} parent=1 // pred_fallthru
      _
    // Predicated region
    $region6: #{tpu_custom_call.1} parent=1 // pred_check
      _
    $region7: #{tpu_custom_call.1} parent=1 // pred_check_branch
      %20 = sbr.rel (0) target = $region9
    $region8: #{tpu_custom_call.1} parent=1 // pred_region
      _
    $region9: #{tpu_custom_call.1} parent=1 // pred_fallthru
      _
    // Predicated region
    $region10: #{tpu_custom_call.1} parent=1 // pred_check
      _
    $region11: #{tpu_custom_call.1} parent=1 // pred_check_branch
      %22 = sbr.rel (0) target = $region13
    $region12: #{tpu_custom_call.1} parent=1 // pred_region
      %23 = dma.done [#allocation3], 256
    $region13: #{tpu_custom_call.1} parent=1 // pred_fallthru
      _
    %v24 = vld [vmem:[#allocation2] sm:$0xff]
    %v25 = vld [vmem:[#allocation2 + $0x8] sm:$0xff]
    %v26 = vld [vmem:[%s1] sm:$0x3]
    %v28 = vlaneseq
    %v29 = vshrl.u32 %v28, 7
    %v30 = vsub.s32 0, %v29
    %v31 = vrot.slane %v26, %v30
    %v32 = vlaneseq
    %v33 = vshrl.u32 %v32, 7
    %v34 = vsub.s32 1, %v33
    %v35 = vrot.slane %v26, %v34
    %v38 = vadd.f32 %v24, %v31
    %v39 = vadd.f32 %v25, %v35
    %40 = vst [vmem:[#allocation5] sm:$0xff] %v38
    %41 = vst [vmem:[#allocation5 + $0x8] sm:$0xff] %v39
    // Predicated region
    $region14: #{tpu_custom_call.1} parent=1 // pred_check
      _
    $region15: #{tpu_custom_call.1} parent=1 // pred_check_branch
      %43 = sbr.rel (0) target = $region17
    $region16: #{tpu_custom_call.1} parent=1 // pred_region
      %s45 = ssub.s32 256, 256
      %46 = vsyncadd [#allocation4], %s45
      %s48 = sshll.u32 [#allocation5], 4
      %s49 = int_to_ptr.vmem [resolvable:$true] %s48
      %51 = dma.vmem_to_hbm [thread:$0]  %s49, 256, %s2, [#allocation4]
    $region17: #{tpu_custom_call.1} parent=1 // pred_fallthru
      _
    // Predicated region
    $region18: #{tpu_custom_call.1} parent=1 // pred_check
      _
    $region19: #{tpu_custom_call.1} parent=1 // pred_check_branch
      %53 = sbr.rel (0) target = $region21
    $region20: #{tpu_custom_call.1} parent=1 // pred_region
      %54 = dma.done [#allocation4], 256
    $region21: #{tpu_custom_call.1} parent=1 // pred_fallthru
      _
    %55 = vsyncpa [#allocation3], 1
    %56 = vsyncpa [#allocation4], 1

</llo_original>
